<compile_context>
chip_gen: v6e
topology: v6e:2x2x1
jax: 0.10.0
libtpu: 0.0.40
codegen_flags: <defaults>
</compile_context>

<pallas_src>
import jax
import jax.numpy as jnp
from jax.experimental import pallas as pl
from jax.experimental.pallas import tpu as pltpu

NEG_SLOPE = 0.05  # LeakyReLU negative slope from the PyTorch module.


def _leaky_relu(x):
    # f32 VPU elementwise; cheap select, no EUP needed.
    return jnp.where(x > 0, x, NEG_SLOPE * x)


def _tags_encoder_kernel(x_ref, w1_ref, b1_ref, w2_ref, b2_ref, w3_ref, b3_ref,
                         out_ref):
    # ---- Layer 1: (tb, n_tags) @ (n_tags, H) -> (tb, H) ----
    x = x_ref[...].astype(jnp.bfloat16)
    h = jnp.dot(x, w1_ref[...], preferred_element_type=jnp.float32) + b1_ref[...]
    h = _leaky_relu(h)

    # ---- Layer 2: (tb, H) @ (H, H) -> (tb, H) ----
    h = jnp.dot(h.astype(jnp.bfloat16), w2_ref[...],
                preferred_element_type=jnp.float32) + b2_ref[...]
    h = _leaky_relu(h)

    # ---- Layer 3: (tb, H) @ (H, O) -> (tb, O) ----
    y = jnp.dot(h.astype(jnp.bfloat16), w3_ref[...],
                preferred_element_type=jnp.float32) + b3_ref[...]
    out_ref[...] = _leaky_relu(y)


def _round_up(x, m):
    return ((x + m - 1) // m) * m


def tags_encoder_forward(tags, params, *, tile_b=None):
    """tags: f32 [B, n_tags] -> f32 [B, output_size]."""
    B, n_tags = tags.shape
    H = params["w1"].shape[0]      # w1: (hidden, n_tags)  (PyTorch layout)
    O = params["w3"].shape[0]      # w3: (output, hidden)

    # Auto-pick batch tile: one grid step for small batches, 512-row tiles for
    # large batches (sublane-aligned multiple of 8, well under the VMEM limit).
    if tile_b is None:
        tile_b = min(512, _round_up(B, 8))
    tile_b = _round_up(tile_b, 8)

    # Pad batch up to a multiple of tile_b (sublane-friendly).
    Bp = _round_up(B, tile_b)
    x = tags.astype(jnp.float32)
    if Bp != B:
        x = jnp.pad(x, ((0, Bp - B), (0, 0)))

    # Glue: [out, in] -> [in, out]; weights bf16 (MXU-native), biases f32 [1, out].
    w1t = params["w1"].T.astype(jnp.bfloat16)    # (n_tags, H)
    w2t = params["w2"].T.astype(jnp.bfloat16)    # (H, H)
    w3t = params["w3"].T.astype(jnp.bfloat16)    # (H, O)
    b1 = params["b1"].reshape(1, H).astype(jnp.float32)
    b2 = params["b2"].reshape(1, H).astype(jnp.float32)
    b3 = params["b3"].reshape(1, O).astype(jnp.float32)

    const = lambda i: (0, 0)   # weights resident in VMEM across batch tiles

    flops = 2 * Bp * (n_tags * H + H * H + H * O)
    bytes_accessed = (x.size * 4 + Bp * O * 4
                      + (w1t.size + w2t.size + w3t.size) * 2
                      + (b1.size + b2.size + b3.size) * 4)

    out = pl.pallas_call(
        _tags_encoder_kernel,
        out_shape=jax.ShapeDtypeStruct((Bp, O), jnp.float32),
        grid_spec=pltpu.PrefetchScalarGridSpec(
            num_scalar_prefetch=0,
            grid=(Bp // tile_b,),
            in_specs=[
                pl.BlockSpec((tile_b, n_tags), lambda i: (i, 0)),
                pl.BlockSpec((n_tags, H), const),
                pl.BlockSpec((1, H), const),
                pl.BlockSpec((H, H), const),
                pl.BlockSpec((1, H), const),
                pl.BlockSpec((H, O), const),
                pl.BlockSpec((1, O), const),
            ],
            out_specs=pl.BlockSpec((tile_b, O), lambda i: (i, 0)),
        ),
        compiler_params=pltpu.CompilerParams(
            dimension_semantics=("parallel",)),
        cost_estimate=pl.CostEstimate(
            flops=flops, transcendentals=0, bytes_accessed=bytes_accessed),
    )(x, w1t, b1, w2t, b2, w3t, b3)
    # TODO(synk): if n_tags / hidden / output grow to many-thousand, tile the
    # feature dims over additional grid axes instead of full-array weight
    # blocks (v7x has only 64 MiB VMEM per TensorCore).
    return out[:B]


def _reference_forward(tags, params):
    """Pure-JAX f32 reference of the PyTorch module."""
    h = tags @ params["w1"].T + params["b1"]
    h = jnp.where(h > 0, h, NEG_SLOPE * h)
    h = h @ params["w2"].T + params["b2"]
    h = jnp.where(h > 0, h, NEG_SLOPE * h)
    y = h @ params["w3"].T + params["b3"]
    return jnp.where(y > 0, y, NEG_SLOPE * y)


def init_params(key, n_tags, hidden_size, output_size):
    """PyTorch-style uniform(-1/sqrt(fan_in), 1/sqrt(fan_in)) init."""
    ks = jax.random.split(key, 6)
    k1 = 1.0 / jnp.sqrt(n_tags)
    k2 = 1.0 / jnp.sqrt(hidden_size)
    return {
        "w1": jax.random.uniform(ks[0], (hidden_size, n_tags), jnp.float32, -k1, k1),
        "b1": jax.random.uniform(ks[1], (hidden_size,), jnp.float32, -k1, k1),
        "w2": jax.random.uniform(ks[2], (hidden_size, hidden_size), jnp.float32, -k2, k2),
        "b2": jax.random.uniform(ks[3], (hidden_size,), jnp.float32, -k2, k2),
        "w3": jax.random.uniform(ks[4], (output_size, hidden_size), jnp.float32, -k2, k2),
        "b3": jax.random.uniform(ks[5], (output_size,), jnp.float32, -k2, k2),
    }


if __name__ == "__main__":
    # Small, lane-friendly demo shapes: hidden/output are multiples of 128.
    n_tags, hidden_size, output_size, batch = 64, 128, 128, 16

    root = jax.random.PRNGKey(0)
    k_params, k_tags = jax.random.split(root)
    params = init_params(k_params, n_tags, hidden_size, output_size)
    tags = jax.random.normal(k_tags, (batch, n_tags), jnp.float32)

    out = jax.block_until_ready(tags_encoder_forward(tags, params))

    ref = _reference_forward(tags, params)
    # bf16 matmul inputs (f32 accumulation) -> loosened tolerance vs f32 reference.
    assert out.shape == ref.shape
    assert jnp.allclose(out, ref, atol=2e-2, rtol=2e-2), (
        float(jnp.max(jnp.abs(out - ref))))

    print("KERNEL_OK")
</pallas_src>

<mosaic_0001>
module attributes {stable_mosaic.version = 11 : i64} {
  func.func @_tags_encoder_kernel(%arg0: i32, %arg1: memref<16x64xf32, #tpu.memory_space<vmem>>, %arg2: memref<64x128xbf16, #tpu.memory_space<vmem>>, %arg3: memref<1x128xf32, #tpu.memory_space<vmem>>, %arg4: memref<128x128xbf16, #tpu.memory_space<vmem>>, %arg5: memref<1x128xf32, #tpu.memory_space<vmem>>, %arg6: memref<128x128xbf16, #tpu.memory_space<vmem>>, %arg7: memref<1x128xf32, #tpu.memory_space<vmem>>, %arg8: memref<16x128xf32, #tpu.memory_space<vmem>>) attributes {dimension_semantics = [#tpu.dimension_semantics<parallel>], iteration_bounds = array<i64: 1>, scalar_prefetch = 0 : i64, scratch_operands = 0 : i64, tpu.core_type = #tpu.core_type<tc>, window_params = [{transform_indices = @transform_0, window_bounds = array<i64: 16, 64>}, {pipeline_mode = #tpu.pipeline_mode<synchronous>, transform_indices = @transform_1, window_bounds = array<i64: 64, 128>}, {pipeline_mode = #tpu.pipeline_mode<synchronous>, transform_indices = @transform_2, window_bounds = array<i64: 1, 128>}, {pipeline_mode = #tpu.pipeline_mode<synchronous>, transform_indices = @transform_3, window_bounds = array<i64: 128, 128>}, {pipeline_mode = #tpu.pipeline_mode<synchronous>, transform_indices = @transform_4, window_bounds = array<i64: 1, 128>}, {pipeline_mode = #tpu.pipeline_mode<synchronous>, transform_indices = @transform_5, window_bounds = array<i64: 128, 128>}, {pipeline_mode = #tpu.pipeline_mode<synchronous>, transform_indices = @transform_6, window_bounds = array<i64: 1, 128>}, {transform_indices = @transform_7, window_bounds = array<i64: 16, 128>}]} {
    %c0 = arith.constant 0 : index
    %c0_0 = arith.constant 0 : index
    %0 = vector.load %arg1[%c0, %c0_0] : memref<16x64xf32, #tpu.memory_space<vmem>>, vector<16x64xf32>
    %1 = arith.truncf %0 : vector<16x64xf32> to vector<16x64xbf16>
    %c0_1 = arith.constant 0 : index
    %c0_2 = arith.constant 0 : index
    %2 = vector.load %arg2[%c0_1, %c0_2] : memref<64x128xbf16, #tpu.memory_space<vmem>>, vector<64x128xbf16>
    %cst = arith.constant dense<0.000000e+00> : vector<16x128xf32>
    %3 = tpu.matmul %1, %2, %cst {dimension_numbers = #tpu.dot_dimension_numbers<[1], [0], [0], [1], [0, 0, 1, 1], [], []>} : vector<16x64xbf16>, vector<64x128xbf16>, vector<16x128xf32> -> vector<16x128xf32>
    %c0_3 = arith.constant 0 : index
    %c0_4 = arith.constant 0 : index
    %4 = vector.load %arg3[%c0_3, %c0_4] : memref<1x128xf32, #tpu.memory_space<vmem>>, vector<1x128xf32>
    %5 = vector.broadcast %4 : vector<1x128xf32> to vector<16x128xf32>
    %6 = arith.addf %3, %5 : vector<16x128xf32>
    %cst_5 = arith.constant 0.000000e+00 : f32
    %7 = vector.broadcast %cst_5 : f32 to vector<16x128xf32>
    %8 = arith.cmpf ogt, %6, %7 : vector<16x128xf32>
    %cst_6 = arith.constant 5.000000e-02 : f32
    %9 = vector.broadcast %cst_6 : f32 to vector<16x128xf32>
    %10 = arith.mulf %9, %6 : vector<16x128xf32>
    %11 = arith.select %8, %6, %10 : vector<16x128xi1>, vector<16x128xf32>
    %12 = arith.truncf %11 : vector<16x128xf32> to vector<16x128xbf16>
    %c0_7 = arith.constant 0 : index
    %c0_8 = arith.constant 0 : index
    %13 = vector.load %arg4[%c0_7, %c0_8] : memref<128x128xbf16, #tpu.memory_space<vmem>>, vector<128x128xbf16>
    %cst_9 = arith.constant dense<0.000000e+00> : vector<16x128xf32>
    %14 = tpu.matmul %12, %13, %cst_9 {dimension_numbers = #tpu.dot_dimension_numbers<[1], [0], [0], [1], [0, 0, 1, 1], [], []>} : vector<16x128xbf16>, vector<128x128xbf16>, vector<16x128xf32> -> vector<16x128xf32>
    %c0_10 = arith.constant 0 : index
    %c0_11 = arith.constant 0 : index
    %15 = vector.load %arg5[%c0_10, %c0_11] : memref<1x128xf32, #tpu.memory_space<vmem>>, vector<1x128xf32>
    %16 = vector.broadcast %15 : vector<1x128xf32> to vector<16x128xf32>
    %17 = arith.addf %14, %16 : vector<16x128xf32>
    %cst_12 = arith.constant 0.000000e+00 : f32
    %18 = vector.broadcast %cst_12 : f32 to vector<16x128xf32>
    %19 = arith.cmpf ogt, %17, %18 : vector<16x128xf32>
    %cst_13 = arith.constant 5.000000e-02 : f32
    %20 = vector.broadcast %cst_13 : f32 to vector<16x128xf32>
    %21 = arith.mulf %20, %17 : vector<16x128xf32>
    %22 = arith.select %19, %17, %21 : vector<16x128xi1>, vector<16x128xf32>
    %23 = arith.truncf %22 : vector<16x128xf32> to vector<16x128xbf16>
    %c0_14 = arith.constant 0 : index
    %c0_15 = arith.constant 0 : index
    %24 = vector.load %arg6[%c0_14, %c0_15] : memref<128x128xbf16, #tpu.memory_space<vmem>>, vector<128x128xbf16>
    %cst_16 = arith.constant dense<0.000000e+00> : vector<16x128xf32>
    %25 = tpu.matmul %23, %24, %cst_16 {dimension_numbers = #tpu.dot_dimension_numbers<[1], [0], [0], [1], [0, 0, 1, 1], [], []>} : vector<16x128xbf16>, vector<128x128xbf16>, vector<16x128xf32> -> vector<16x128xf32>
    %c0_17 = arith.constant 0 : index
    %c0_18 = arith.constant 0 : index
    %26 = vector.load %arg7[%c0_17, %c0_18] : memref<1x128xf32, #tpu.memory_space<vmem>>, vector<1x128xf32>
    %27 = vector.broadcast %26 : vector<1x128xf32> to vector<16x128xf32>
    %28 = arith.addf %25, %27 : vector<16x128xf32>
    %cst_19 = arith.constant 0.000000e+00 : f32
    %29 = vector.broadcast %cst_19 : f32 to vector<16x128xf32>
    %30 = arith.cmpf ogt, %28, %29 : vector<16x128xf32>
    %cst_20 = arith.constant 5.000000e-02 : f32
    %31 = vector.broadcast %cst_20 : f32 to vector<16x128xf32>
    %32 = arith.mulf %31, %28 : vector<16x128xf32>
    %33 = arith.select %30, %28, %32 : vector<16x128xi1>, vector<16x128xf32>
    %c0_21 = arith.constant 0 : index
    %c0_22 = arith.constant 0 : index
    %34 = vector.load %arg8[%c0_21, %c0_22] : memref<16x128xf32, #tpu.memory_space<vmem>>, vector<16x128xf32>
    tpu.vector_store %arg8[%c0_21, %c0_22], %33 {strides = array<i32>} : memref<16x128xf32, #tpu.memory_space<vmem>>, vector<16x128xf32>,
    return
  }
  func.func @transform_0(%arg0: i32) -> (i32, i32) {
    %c0_i32 = arith.constant 0 : i32
    %c0_i32_0 = arith.constant 0 : i32
    return %arg0, %c0_i32 : i32, i32
  }
  func.func @transform_1(%arg0: i32) -> (i32, i32) {
    %c0_i32 = arith.constant 0 : i32
    %c0_i32_0 = arith.constant 0 : i32
    %c0_i32_1 = arith.constant 0 : i32
    return %c0_i32, %c0_i32_0 : i32, i32
  }
  func.func @transform_2(%arg0: i32) -> (i32, i32) {
    %c0_i32 = arith.constant 0 : i32
    %c0_i32_0 = arith.constant 0 : i32
    %c0_i32_1 = arith.constant 0 : i32
    return %c0_i32, %c0_i32_0 : i32, i32
  }
  func.func @transform_3(%arg0: i32) -> (i32, i32) {
    %c0_i32 = arith.constant 0 : i32
    %c0_i32_0 = arith.constant 0 : i32
    %c0_i32_1 = arith.constant 0 : i32
    return %c0_i32, %c0_i32_0 : i32, i32
  }
  func.func @transform_4(%arg0: i32) -> (i32, i32) {
    %c0_i32 = arith.constant 0 : i32
    %c0_i32_0 = arith.constant 0 : i32
    %c0_i32_1 = arith.constant 0 : i32
    return %c0_i32, %c0_i32_0 : i32, i32
  }
  func.func @transform_5(%arg0: i32) -> (i32, i32) {
    %c0_i32 = arith.constant 0 : i32
    %c0_i32_0 = arith.constant 0 : i32
    %c0_i32_1 = arith.constant 0 : i32
    return %c0_i32, %c0_i32_0 : i32, i32
  }
  func.func @transform_6(%arg0: i32) -> (i32, i32) {
    %c0_i32 = arith.constant 0 : i32
    %c0_i32_0 = arith.constant 0 : i32
    %c0_i32_1 = arith.constant 0 : i32
    return %c0_i32, %c0_i32_0 : i32, i32
  }
  func.func @transform_7(%arg0: i32) -> (i32, i32) {
    %c0_i32 = arith.constant 0 : i32
    %c0_i32_0 = arith.constant 0 : i32
    return %arg0, %c0_i32 : i32, i32
  }
}

</mosaic_0001>

<llo_original>
// kernel: tpu_custom_call.1
$region0: #{tpu_custom_call.1}
  #allocation0 [shape = 'u32[]', space=smem, size = 0x4, offset = 0x4, fixed_abs, tag = 'smem constant byte address 0x4 - core index']
  #allocation1 [shape = 'u32[144,128]{1,0:T(1,128)}', space=vmem, size = 0x12000, scoped, tag = 'internal scratch']
  %s0 = inlined_call_operand.hbm [shape: f32[16,64], index: 0, kind: input, shape index: {}]
  %s1 = inlined_call_operand.hbm [shape: bf16[64,128], index: 1, kind: input, shape index: {}]
  %s2 = inlined_call_operand.vmem [shape: f32[1,128], index: 2, kind: input, shape index: {}]
  %s3 = inlined_call_operand.hbm [shape: bf16[128,128], index: 3, kind: input, shape index: {}]
  %s4 = inlined_call_operand.vmem [shape: f32[1,128], index: 4, kind: input, shape index: {}]
  %s5 = inlined_call_operand.hbm [shape: bf16[128,128], index: 5, kind: input, shape index: {}]
  %s6 = inlined_call_operand.vmem [shape: f32[1,128], index: 6, kind: input, shape index: {}]
  %s7 = inlined_call_operand.hbm [shape: f32[16,128], index: 7, kind: output, shape index: {}]
  %s8 = sld [smem:[#allocation0]]
  $region54: #{tpu_custom_call.1} parent=0
    _
  %s10 = ssub.s32 1, %s8
  %s11 = scalar_select 0, %s10, %s8
  $region1: #{tpu_custom_call.1} parent=0
    #allocation2 [shape = 'u8[8192]{0}', space=vmem, size = 0x2000, scoped, tag = 'input window, operand 0, single buffered']
    #allocation3 [shape = 's32[1]{0}', space=sflag, size = 0x4, scoped, tag = 'scoped memory for tpu_custom_call.1']
    #allocation4 [shape = 's32[1]{0}', space=sflag, size = 0x4, scoped, tag = 'scoped memory for tpu_custom_call.1']
    #allocation5 [shape = 'u8[16384]{0}', space=vmem, size = 0x4000, scoped, tag = 'input window, operand 1, single buffered']
    #allocation6 [shape = 's32[1]{0}', space=sflag, size = 0x4, scoped, tag = 'scoped memory for tpu_custom_call.1']
    #allocation7 [shape = 'u8[32768]{0}', space=vmem, size = 0x8000, scoped, tag = 'input window, operand 3, single buffered']
    #allocation8 [shape = 'u8[32768]{0}', space=vmem, size = 0x8000, scoped, tag = 'input window, operand 5, single buffered']
    #allocation9 [shape = 's32[1]{0}', space=sflag, size = 0x4, scoped, tag = 'scoped memory for tpu_custom_call.1']
    #allocation10 [shape = 'u8[8192]{0}', space=vmem, size = 0x2000, scoped, tag = 'output window, operand 0, single buffered']
    %12 = vsyncpa [#allocation3], 0
    %13 = vsyncpa [#allocation6], 0
    %14 = vsyncpa [#allocation9], 0
    %15 = vsyncpa [#allocation4], 0
    // Predicated region
    $region2: #{tpu_custom_call.1} parent=1 // pred_check
      _
    $region3: #{tpu_custom_call.1} parent=1 // pred_check_branch
      %17 = sbr.rel (0) target = $region5
    $region4: #{tpu_custom_call.1} parent=1 // pred_region
      %s19 = ssub.s32 256, 256
      %20 = vsyncadd [#allocation3], %s19
      %s21 = sshll.u32 [#allocation2], 4
      %s22 = int_to_ptr.vmem [resolvable:$true] %s21
      %27 = dma.hbm_to_vmem [thread:$0]  %s0, 256, %s22, [#allocation3], 128, 128, 8
    $region5: #{tpu_custom_call.1} parent=1 // pred_fallthru
      _
    // Predicated region
    $region6: #{tpu_custom_call.1} parent=1 // pred_check
      _
    $region7: #{tpu_custom_call.1} parent=1 // pred_check_branch
      %29 = sbr.rel (0) target = $region9
    $region8: #{tpu_custom_call.1} parent=1 // pred_region
      %s31 = ssub.s32 512, 512
      %32 = vsyncadd [#allocation6], %s31
      %s33 = sshll.u32 [#allocation5], 4
      %s34 = int_to_ptr.vmem [resolvable:$true] %s33
      %39 = dma.hbm_to_vmem [thread:$0]  %s1, 512, %s34, [#allocation6], 64, 64, 4
    $region9: #{tpu_custom_call.1} parent=1 // pred_fallthru
      _
    // Predicated region
    $region10: #{tpu_custom_call.1} parent=1 // pred_check
      _
    $region11: #{tpu_custom_call.1} parent=1 // pred_check_branch
      %41 = sbr.rel (0) target = $region13
    $region12: #{tpu_custom_call.1} parent=1 // pred_region
      _
    $region13: #{tpu_custom_call.1} parent=1 // pred_fallthru
      _
    // Predicated region
    $region14: #{tpu_custom_call.1} parent=1 // pred_check
      _
    $region15: #{tpu_custom_call.1} parent=1 // pred_check_branch
      %43 = sbr.rel (0) target = $region17
    $region16: #{tpu_custom_call.1} parent=1 // pred_region
      %s45 = ssub.s32 1024, 1024
      %46 = vsyncadd [#allocation6], %s45
      %s47 = sshll.u32 [#allocation7], 4
      %s48 = int_to_ptr.vmem [resolvable:$true] %s47
      %53 = dma.hbm_to_vmem [thread:$0]  %s3, 1024, %s48, [#allocation6], 64, 64, 4
    $region17: #{tpu_custom_call.1} parent=1 // pred_fallthru
      _
    // Predicated region
    $region18: #{tpu_custom_call.1} parent=1 // pred_check
      _
    $region19: #{tpu_custom_call.1} parent=1 // pred_check_branch
      %55 = sbr.rel (0) target = $region21
    $region20: #{tpu_custom_call.1} parent=1 // pred_region
      _
    $region21: #{tpu_custom_call.1} parent=1 // pred_fallthru
      _
    // Predicated region
    $region22: #{tpu_custom_call.1} parent=1 // pred_check
      _
    $region23: #{tpu_custom_call.1} parent=1 // pred_check_branch
      %57 = sbr.rel (0) target = $region25
    $region24: #{tpu_custom_call.1} parent=1 // pred_region
      %s59 = ssub.s32 1024, 1024
      %60 = vsyncadd [#allocation9], %s59
      %s61 = sshll.u32 [#allocation8], 4
      %s62 = int_to_ptr.vmem [resolvable:$true] %s61
      %67 = dma.hbm_to_vmem [thread:$0]  %s5, 1024, %s62, [#allocation9], 64, 64, 4
    $region25: #{tpu_custom_call.1} parent=1 // pred_fallthru
      _
    // Predicated region
    $region26: #{tpu_custom_call.1} parent=1 // pred_check
      _
    $region27: #{tpu_custom_call.1} parent=1 // pred_check_branch
      %69 = sbr.rel (0) target = $region29
    $region28: #{tpu_custom_call.1} parent=1 // pred_region
      _
    $region29: #{tpu_custom_call.1} parent=1 // pred_fallthru
      _
    // Predicated region
    $region30: #{tpu_custom_call.1} parent=1 // pred_check
      _
    $region31: #{tpu_custom_call.1} parent=1 // pred_check_branch
      %71 = sbr.rel (0) target = $region33
    $region32: #{tpu_custom_call.1} parent=1 // pred_region
      %72 = dma.done [#allocation3], 256
    $region33: #{tpu_custom_call.1} parent=1 // pred_fallthru
      _
    // Predicated region
    $region34: #{tpu_custom_call.1} parent=1 // pred_check
      _
    $region35: #{tpu_custom_call.1} parent=1 // pred_check_branch
      %74 = sbr.rel (0) target = $region37
    $region36: #{tpu_custom_call.1} parent=1 // pred_region
      %75 = dma.done [#allocation6], 512
    $region37: #{tpu_custom_call.1} parent=1 // pred_fallthru
      _
    // Predicated region
    $region38: #{tpu_custom_call.1} parent=1 // pred_check
      _
    $region39: #{tpu_custom_call.1} parent=1 // pred_check_branch
      %77 = sbr.rel (0) target = $region41
    $region40: #{tpu_custom_call.1} parent=1 // pred_region
      %78 = dma.done [#allocation6], 1024
    $region41: #{tpu_custom_call.1} parent=1 // pred_fallthru
      _
    // Predicated region
    $region42: #{tpu_custom_call.1} parent=1 // pred_check
      _
    $region43: #{tpu_custom_call.1} parent=1 // pred_check_branch
      %80 = sbr.rel (0) target = $region45
    $region44: #{tpu_custom_call.1} parent=1 // pred_region
      %81 = dma.done [#allocation9], 1024
    $region45: #{tpu_custom_call.1} parent=1 // pred_fallthru
      _
    %v83 = vld [vmem:[#allocation2] sm:$0xff]
    %v84 = vld [vmem:[#allocation2 + $0x8] sm:$0xff]
    %v85 = vpack.c.bf16 %v84, %v83
    %v86 = vld [vmem:[#allocation5] sm:$0xf]
    %v87 = vld [vmem:[#allocation5 + $0x4] sm:$0xf]
    %v88 = vld [vmem:[#allocation5 + $0x8] sm:$0xf]
    %v89 = vld [vmem:[#allocation5 + $0xc] sm:$0xf]
    %v90 = vld [vmem:[#allocation5 + $0x10] sm:$0xf]
    %v91 = vld [vmem:[#allocation5 + $0x14] sm:$0xf]
    %v92 = vld [vmem:[#allocation5 + $0x18] sm:$0xf]
    %v93 = vld [vmem:[#allocation5 + $0x1c] sm:$0xf]
    %v94 = vld [vmem:[%s2] sm:$0x1]
    %v96 = vlaneseq
    %v97 = vshrl.u32 %v96, 7
    %v98 = vsub.s32 0, %v97
    %v99 = vrot.slane %v94, %v98
    %v109 = vunpack.c.l.b16 %v86
    %v110 = vunpack.c.l.b16 %v87
    %v111 = vunpack.c.l.b16 %v88
    %v112 = vunpack.c.l.b16 %v89
    %v113 = vunpack.c.l.b16 %v90
    %v114 = vunpack.c.l.b16 %v91
    %v115 = vunpack.c.l.b16 %v92
    %v116 = vunpack.c.l.b16 %v93
    %v117 = vpack.c.b16 %v110, %v109
    %v118 = vpack.c.b16 %v112, %v111
    %v119 = vpack.c.b16 %v114, %v113
    %v120 = vpack.c.b16 %v116, %v115
    %vm125 = vcmask 523264
    %v127 = vsel %vm125, %v85, 0
    %129 = vmatprep.subr.bf16.mxu0 0
    %130 = vmatpush1.bf16.msra.mxu0 0
    %131 = vmatprep.subr.bf16.mxu0 0
    %132 = vmatpush1.bf16.msra.mxu0 0
    %133 = vmatprep.subr.bf16.mxu0 0
    %134 = vmatpush1.bf16.msra.mxu0 0
    %135 = vmatprep.subr.bf16.mxu0 0
    %136 = vmatpush1.bf16.msra.mxu0 0
    %137 = vmatprep.subr.bf16.mxu0 0
    %138 = vmatpush1.bf16.msra.mxu0 %v120
    %139 = vmatprep.subr.bf16.mxu0 0
    %140 = vmatpush1.bf16.msra.mxu0 %v119
    %141 = vmatprep.subr.bf16.mxu0 0
    %142 = vmatpush1.bf16.msra.mxu0 %v118
    %143 = vmatprep.subr.bf16.mxu0 0
    %144 = vmatpush1.bf16.msra.mxu0 %v117
    %145 = vmatprep.subr.bf16.mxu0 0
    %146 = vmatpush2.bf16.msra.mxu0 0
    %147 = vmatprep.subr.bf16.mxu0 0
    %148 = vmatpush2.bf16.msra.mxu0 0
    %149 = vmatprep.subr.bf16.mxu0 0
    %150 = vmatpush2.bf16.msra.mxu0 0
    %151 = vmatprep.subr.bf16.mxu0 0
    %152 = vmatpush2.bf16.msra.mxu0 0
    %153 = vmatprep.subr.bf16.mxu0 0
    %154 = vmatpush2.bf16.msra.mxu0 0
    %155 = vmatprep.subr.bf16.mxu0 0
    %156 = vmatpush2.bf16.msra.mxu0 0
    %157 = vmatprep.subr.bf16.mxu0 0
    %158 = vmatpush2.bf16.msra.mxu0 0
    %159 = vmatprep.subr.bf16.mxu0 0
    %160 = vmatpush2.bf16.msra.mxu0 0
    %161 = vmatprep.mubr.bf16.mxu0 0
    %162 = vmatmul.mubr.bf16.gmra.mxu0 %v127
    %v163 = vpop.f32.mrf.mxu0
    %v164 = vadd.f32 %v99, %v163
    %v165 = vpop.f32.mrf.mxu0
    %v166 = vpop.f32.mrf.mxu0
    %v167 = vadd.f32 %v99, %v166
    %v168 = vpop.f32.mrf.mxu0
    %169 = vdwg.mxu0
    %vm170 = vcmp.gt.f32.partialorder %v164, 0.0
    %vm171 = vcmp.gt.f32.partialorder %v167, 0.0
    %v172 = vmul.f32 %v164, 0.05
    %v173 = vmul.f32 %v167, 0.05
    %v174 = vsel %vm170, %v164, %v172
    %v175 = vsel %vm171, %v167, %v173
    %v176 = vpack.c.bf16 %v175, %v174
    %v177 = vld [vmem:[#allocation7] sm:$0xf]
    %v178 = vld [vmem:[#allocation7 + $0x4] sm:$0xf]
    %v179 = vld [vmem:[#allocation7 + $0x8] sm:$0xf]
    %v180 = vld [vmem:[#allocation7 + $0xc] sm:$0xf]
    %v181 = vld [vmem:[#allocation7 + $0x10] sm:$0xf]
    %v182 = vld [vmem:[#allocation7 + $0x14] sm:$0xf]
    %v183 = vld [vmem:[#allocation7 + $0x18] sm:$0xf]
    %v184 = vld [vmem:[#allocation7 + $0x1c] sm:$0xf]
    %v185 = vld [vmem:[#allocation7 + $0x20] sm:$0xf]
    %v186 = vld [vmem:[#allocation7 + $0x24] sm:$0xf]
    %v187 = vld [vmem:[#allocation7 + $0x28] sm:$0xf]
    %v188 = vld [vmem:[#allocation7 + $0x2c] sm:$0xf]
    %v189 = vld [vmem:[#allocation7 + $0x30] sm:$0xf]
    %v190 = vld [vmem:[#allocation7 + $0x34] sm:$0xf]
    %v191 = vld [vmem:[#allocation7 + $0x38] sm:$0xf]
    %v192 = vld [vmem:[#allocation7 + $0x3c] sm:$0xf]
    %v193 = vld [vmem:[%s4] sm:$0x1]
    %v195 = vlaneseq
    %v196 = vshrl.u32 %v195, 7
    %v197 = vsub.s32 0, %v196
    %v198 = vrot.slane %v193, %v197
    %v216 = vunpack.c.l.b16 %v177
    %v217 = vunpack.c.l.b16 %v178
    %v218 = vunpack.c.l.b16 %v179
    %v219 = vunpack.c.l.b16 %v180
    %v220 = vunpack.c.l.b16 %v181
    %v221 = vunpack.c.l.b16 %v182
    %v222 = vunpack.c.l.b16 %v183
    %v223 = vunpack.c.l.b16 %v184
    %v224 = vunpack.c.l.b16 %v185
    %v225 = vunpack.c.l.b16 %v186
    %v226 = vunpack.c.l.b16 %v187
    %v227 = vunpack.c.l.b16 %v188
    %v228 = vunpack.c.l.b16 %v189
    %v229 = vunpack.c.l.b16 %v190
    %v230 = vunpack.c.l.b16 %v191
    %v231 = vunpack.c.l.b16 %v192
    %v232 = vpack.c.b16 %v217, %v216
    %v233 = vpack.c.b16 %v219, %v218
    %v234 = vpack.c.b16 %v221, %v220
    %v235 = vpack.c.b16 %v223, %v222
    %v236 = vpack.c.b16 %v225, %v224
    %v237 = vpack.c.b16 %v227, %v226
    %v238 = vpack.c.b16 %v229, %v228
    %v239 = vpack.c.b16 %v231, %v230
    %248 = vmatprep.subr.bf16.mxu0 0
    %249 = vmatpush1.bf16.msra.mxu0 %v239
    %250 = vmatprep.subr.bf16.mxu0 0
    %251 = vmatpush1.bf16.msra.mxu0 %v238
    %252 = vmatprep.subr.bf16.mxu0 0
    %253 = vmatpush1.bf16.msra.mxu0 %v237
    %254 = vmatprep.subr.bf16.mxu0 0
    %255 = vmatpush1.bf16.msra.mxu0 %v236
    %256 = vmatprep.subr.bf16.mxu0 0
    %257 = vmatpush1.bf16.msra.mxu0 %v235
    %258 = vmatprep.subr.bf16.mxu0 0
    %259 = vmatpush1.bf16.msra.mxu0 %v234
    %260 = vmatprep.subr.bf16.mxu0 0
    %261 = vmatpush1.bf16.msra.mxu0 %v233
    %262 = vmatprep.subr.bf16.mxu0 0
    %263 = vmatpush1.bf16.msra.mxu0 %v232
    %264 = vmatprep.subr.bf16.mxu0 0
    %265 = vmatpush2.bf16.msra.mxu0 0
    %266 = vmatprep.subr.bf16.mxu0 0
    %267 = vmatpush2.bf16.msra.mxu0 0
    %268 = vmatprep.subr.bf16.mxu0 0
    %269 = vmatpush2.bf16.msra.mxu0 0
    %270 = vmatprep.subr.bf16.mxu0 0
    %271 = vmatpush2.bf16.msra.mxu0 0
    %272 = vmatprep.subr.bf16.mxu0 0
    %273 = vmatpush2.bf16.msra.mxu0 0
    %274 = vmatprep.subr.bf16.mxu0 0
    %275 = vmatpush2.bf16.msra.mxu0 0
    %276 = vmatprep.subr.bf16.mxu0 0
    %277 = vmatpush2.bf16.msra.mxu0 0
    %278 = vmatprep.subr.bf16.mxu0 0
    %279 = vmatpush2.bf16.msra.mxu0 0
    %280 = vmatprep.mubr.bf16.mxu0 0
    %281 = vmatmul.mubr.bf16.gmra.mxu0 %v176
    %v282 = vpop.f32.mrf.mxu0
    %v283 = vadd.f32 %v198, %v282
    %v284 = vpop.f32.mrf.mxu0
    %v285 = vpop.f32.mrf.mxu0
    %v286 = vadd.f32 %v198, %v285
    %v287 = vpop.f32.mrf.mxu0
    %288 = vdwg.mxu0
    %vm289 = vcmp.gt.f32.partialorder %v283, 0.0
    %vm290 = vcmp.gt.f32.partialorder %v286, 0.0
    %v291 = vmul.f32 %v283, 0.05
    %v292 = vmul.f32 %v286, 0.05
    %v293 = vsel %vm289, %v283, %v291
    %v294 = vsel %vm290, %v286, %v292
    %v295 = vpack.c.bf16 %v294, %v293
    %v296 = vld [vmem:[#allocation8] sm:$0xf]
    %v297 = vld [vmem:[#allocation8 + $0x4] sm:$0xf]
    %v298 = vld [vmem:[#allocation8 + $0x8] sm:$0xf]
    %v299 = vld [vmem:[#allocation8 + $0xc] sm:$0xf]
    %v300 = vld [vmem:[#allocation8 + $0x10] sm:$0xf]
    %v301 = vld [vmem:[#allocation8 + $0x14] sm:$0xf]
    %v302 = vld [vmem:[#allocation8 + $0x18] sm:$0xf]
    %v303 = vld [vmem:[#allocation8 + $0x1c] sm:$0xf]
    %v304 = vld [vmem:[#allocation8 + $0x20] sm:$0xf]
    %v305 = vld [vmem:[#allocation8 + $0x24] sm:$0xf]
    %v306 = vld [vmem:[#allocation8 + $0x28] sm:$0xf]
    %v307 = vld [vmem:[#allocation8 + $0x2c] sm:$0xf]
    %v308 = vld [vmem:[#allocation8 + $0x30] sm:$0xf]
    %v309 = vld [vmem:[#allocation8 + $0x34] sm:$0xf]
    %v310 = vld [vmem:[#allocation8 + $0x38] sm:$0xf]
    %v311 = vld [vmem:[#allocation8 + $0x3c] sm:$0xf]
    %v312 = vld [vmem:[%s6] sm:$0x1]
    %v314 = vlaneseq
    %v315 = vshrl.u32 %v314, 7
    %v316 = vsub.s32 0, %v315
    %v317 = vrot.slane %v312, %v316
    %v335 = vunpack.c.l.b16 %v296
    %v336 = vunpack.c.l.b16 %v297
    %v337 = vunpack.c.l.b16 %v298
    %v338 = vunpack.c.l.b16 %v299
    %v339 = vunpack.c.l.b16 %v300
    %v340 = vunpack.c.l.b16 %v301
    %v341 = vunpack.c.l.b16 %v302
    %v342 = vunpack.c.l.b16 %v303
    %v343 = vunpack.c.l.b16 %v304
    %v344 = vunpack.c.l.b16 %v305
    %v345 = vunpack.c.l.b16 %v306
    %v346 = vunpack.c.l.b16 %v307
    %v347 = vunpack.c.l.b16 %v308
    %v348 = vunpack.c.l.b16 %v309
    %v349 = vunpack.c.l.b16 %v310
    %v350 = vunpack.c.l.b16 %v311
    %v351 = vpack.c.b16 %v336, %v335
    %v352 = vpack.c.b16 %v338, %v337
    %v353 = vpack.c.b16 %v340, %v339
    %v354 = vpack.c.b16 %v342, %v341
    %v355 = vpack.c.b16 %v344, %v343
    %v356 = vpack.c.b16 %v346, %v345
    %v357 = vpack.c.b16 %v348, %v347
    %v358 = vpack.c.b16 %v350, %v349
    %367 = vmatprep.subr.bf16.mxu0 0
    %368 = vmatpush1.bf16.msra.mxu0 %v358
    %369 = vmatprep.subr.bf16.mxu0 0
    %370 = vmatpush1.bf16.msra.mxu0 %v357
    %371 = vmatprep.subr.bf16.mxu0 0
    %372 = vmatpush1.bf16.msra.mxu0 %v356
    %373 = vmatprep.subr.bf16.mxu0 0
    %374 = vmatpush1.bf16.msra.mxu0 %v355
    %375 = vmatprep.subr.bf16.mxu0 0
    %376 = vmatpush1.bf16.msra.mxu0 %v354
    %377 = vmatprep.subr.bf16.mxu0 0
    %378 = vmatpush1.bf16.msra.mxu0 %v353
    %379 = vmatprep.subr.bf16.mxu0 0
    %380 = vmatpush1.bf16.msra.mxu0 %v352
    %381 = vmatprep.subr.bf16.mxu0 0
    %382 = vmatpush1.bf16.msra.mxu0 %v351
    %383 = vmatprep.subr.bf16.mxu0 0
    %384 = vmatpush2.bf16.msra.mxu0 0
    %385 = vmatprep.subr.bf16.mxu0 0
    %386 = vmatpush2.bf16.msra.mxu0 0
    %387 = vmatprep.subr.bf16.mxu0 0
    %388 = vmatpush2.bf16.msra.mxu0 0
    %389 = vmatprep.subr.bf16.mxu0 0
    %390 = vmatpush2.bf16.msra.mxu0 0
    %391 = vmatprep.subr.bf16.mxu0 0
    %392 = vmatpush2.bf16.msra.mxu0 0
    %393 = vmatprep.subr.bf16.mxu0 0
    %394 = vmatpush2.bf16.msra.mxu0 0
    %395 = vmatprep.subr.bf16.mxu0 0
    %396 = vmatpush2.bf16.msra.mxu0 0
    %397 = vmatprep.subr.bf16.mxu0 0
    %398 = vmatpush2.bf16.msra.mxu0 0
    %399 = vmatprep.mubr.bf16.mxu0 0
    %400 = vmatmul.mubr.bf16.gmra.mxu0 %v295
    %v401 = vpop.f32.mrf.mxu0
    %v402 = vadd.f32 %v317, %v401
    %v403 = vpop.f32.mrf.mxu0
    %v404 = vpop.f32.mrf.mxu0
    %v405 = vadd.f32 %v317, %v404
    %v406 = vpop.f32.mrf.mxu0
    %407 = vdwg.mxu0
    %vm408 = vcmp.gt.f32.partialorder %v402, 0.0
    %vm409 = vcmp.gt.f32.partialorder %v405, 0.0
    %v410 = vmul.f32 %v402, 0.05
    %v411 = vmul.f32 %v405, 0.05
    %v412 = vsel %vm408, %v402, %v410
    %v413 = vsel %vm409, %v405, %v411
    %414 = vst [vmem:[#allocation10] sm:$0xff] %v412
    %415 = vst [vmem:[#allocation10 + $0x8] sm:$0xff] %v413
    // Predicated region
    $region46: #{tpu_custom_call.1} parent=1 // pred_check
      _
    $region47: #{tpu_custom_call.1} parent=1 // pred_check_branch
      %417 = sbr.rel (0) target = $region49
    $region48: #{tpu_custom_call.1} parent=1 // pred_region
      %s419 = ssub.s32 256, 256
      %420 = vsyncadd [#allocation4], %s419
      %s421 = sshll.u32 [#allocation10], 4
      %s422 = int_to_ptr.vmem [resolvable:$true] %s421
      %427 = dma.vmem_to_hbm [thread:$0]  %s422, 256, %s7, [#allocation4], 128, 128, 8
    $region49: #{tpu_custom_call.1} parent=1 // pred_fallthru
      _
    // Predicated region
    $region50: #{tpu_custom_call.1} parent=1 // pred_check
      _
    $region51: #{tpu_custom_call.1} parent=1 // pred_check_branch
      %429 = sbr.rel (0) target = $region53
    $region52: #{tpu_custom_call.1} parent=1 // pred_region
      %430 = dma.done [#allocation4], 256
    $region53: #{tpu_custom_call.1} parent=1 // pred_fallthru
      _
    %431 = vsyncpa [#allocation3], 1
    %432 = vsyncpa [#allocation6], 1
    %433 = vsyncpa [#allocation9], 1
    %434 = vsyncpa [#allocation4], 1

</llo_original>
